<compile_context>
chip_gen: v5e
topology: v5e:2x2
jax: 0.10.0
libtpu: 0.0.40
codegen_flags: <defaults>
</compile_context>

<pallas_src>
from functools import partial

import numpy as np
import jax
import jax.numpy as jnp
from jax.experimental import pallas as pl
from jax.experimental.pallas import tpu as pltpu


def _round_up(n, m):
    return ((n + m - 1) // m) * m


# ----------------------------------------------------------------------------
# Fused kernel.  Per K-tile:
#   acc[Nc, Rp] += (XY_tile [Nc, tile_k] bf16) . (W_tile [Rp, tile_k] bf16)^T
# Finalize (last K step):
#   feat = relu(acc + b);  fx = feat[:Npx], fy = feat[Npx:]
#   o[i, j] = sum_r |fx[j, r] - fy[i, r]|^p     (gram form for p == 2)
# ----------------------------------------------------------------------------
def _fused_metric_kernel(xy_ref, w_ref, b_ref, o_ref, acc_ref, *, p, npx):
    k = pl.program_id(0)

    @pl.when(k == 0)
    def _():
        acc_ref[...] = jnp.zeros_like(acc_ref)

    # Both operands are lane-dense bf16 [rows, tile_k]; contract the last dims
    # (A @ B^T) on the MXU with f32 accumulation.
    acc_ref[...] += jax.lax.dot_general(
        xy_ref[...], w_ref[...],
        dimension_numbers=(((1,), (1,)), ((), ())),
        preferred_element_type=jnp.float32)

    @pl.when(k == pl.num_programs(0) - 1)
    def _():
        feat = jnp.maximum(acc_ref[...] + b_ref[...], 0.0)   # [Nc, Rp] f32
        fx = feat[:npx, :]                                    # [Npx, Rp]
        fy = feat[npx:, :]                                    # [Npy, Rp]
        rp = feat.shape[-1]
        if p == 2:
            # ||fy_i||^2 + ||fx_j||^2 - 2 <fy_i, fx_j>; clamp at 0 against
            # catastrophic cancellation for near-identical inputs.
            gram = jax.lax.dot_general(
                fy, fx, (((1,), (1,)), ((), ())),
                preferred_element_type=jnp.float32)           # [Npy, Npx]
            sq_y = jnp.sum(fy * fy, axis=-1, keepdims=True)   # [Npy, 1]
            # Column-norm row vector via a tiny [1, Rp] ones dot (same
            # dot_general pattern as above -> robust lowering, ~free).
            sq_x_row = jax.lax.dot_general(
                jnp.ones((1, rp), jnp.float32), fx * fx,
                (((1,), (1,)), ((), ())),
                preferred_element_type=jnp.float32)           # [1, Npx]
            s = jnp.maximum(sq_y + sq_x_row - 2.0 * gram, 0.0)
        else:
            # TODO(synk): tile the pairwise reduction over y-blocks if batch
            # grows large (broadcasted [Npy, Npx, Rp] diff held live here).
            diff = fx[None, :, :] - fy[:, None, :]
            if p == 1:
                s = jnp.sum(jnp.abs(diff), axis=-1)
            else:
                s = jnp.sum(jnp.abs(diff) ** p, axis=-1)
        o_ref[...] = s  # tiny output; masked store negligible


def fused_perceptual_sums(xy_pad, w_rT, b_r, p, *, npx, npy, tile_k):
    """xy_pad: [Npx+Npy, Kp] bf16 (x rows then y rows), w_rT: [Rp, Kp] bf16,
    b_r: [1, Rp] f32  ->  [Npy, Npx] f32 of sum_r |fx[j] - fy[i]|^p."""
    nc, kp = xy_pad.shape
    rp = w_rT.shape[0]
    assert kp % tile_k == 0
    grid_k = kp // tile_k
    return pl.pallas_call(
        partial(_fused_metric_kernel, p=p, npx=npx),
        out_shape=jax.ShapeDtypeStruct((npy, npx), jnp.float32),
        grid_spec=pltpu.PrefetchScalarGridSpec(
            num_scalar_prefetch=0,
            grid=(grid_k,),
            in_specs=[
                pl.BlockSpec((nc, tile_k), lambda k: (0, k)),   # bf16 LHS K-tile
                pl.BlockSpec((rp, tile_k), lambda k: (0, k)),   # packed weight K-tile
                pl.BlockSpec((1, rp), lambda k: (0, 0)),        # reduced bias
            ],
            out_specs=pl.BlockSpec((npy, npx), lambda k: (0, 0)),  # resident out
            scratch_shapes=[pltpu.VMEM((nc, rp), jnp.float32)],    # single f32 acc
        ),
        compiler_params=pltpu.CompilerParams(
            dimension_semantics=("arbitrary",)),   # K axis is a reduction
    )(xy_pad, w_rT, b_r)


# ----------------------------------------------------------------------------
# PerceptualMetric (JAX/Pallas port)
# ----------------------------------------------------------------------------
class PerceptualMetricPallas:
    # Cap per review: 8K is enough for v5e, 16K ideal for v6e, 16-32K for v7x.
    # 16K keeps the double-buffered VMEM footprint ~3 MB (w: 2*Rp*tile_k*2 B,
    # lhs: 2*16*tile_k*2 B), far under every generation's scoped-VMEM default.
    TILE_K_CAP = 16384

    def __init__(self, w, b, p=2, latent_dim=2048, indices=None, seed=0):
        self.p = p
        self.norm_const = 0.0
        self.latent_dim = latent_dim
        reduced_latent_dim = max(1, int(0.01 * latent_dim))
        if indices is None:
            rng = np.random.RandomState(seed)
            self.indices = np.sort(
                rng.choice(latent_dim, size=reduced_latent_dim, replace=False))
        else:
            self.indices = np.asarray(indices)

        w_np = np.asarray(w, dtype=np.float32)
        b_np = np.asarray(b, dtype=np.float32)
        K = w_np.shape[0]
        R = int(self.indices.shape[0])

        # Reduction-axis tiling: n_tiles chosen so tile_k <= cap, then tile_k
        # rounded to 128 lanes with minimal K padding (zero pad cols are inert).
        kp_min = _round_up(K, 128)
        n_tiles = -(-kp_min // self.TILE_K_CAP)
        self.tile_k = _round_up(-(-kp_min // n_tiles), 128)
        Kp = self.tile_k * n_tiles

        # Fold the latent-index gather into the weights; store TRANSPOSED and
        # densely packed: [Rp, Kp] with Rp = round_up(R, 16) (bf16 sublane
        # packing).  Zero-padded R rows give zero features for both x and y,
        # so they cancel in the difference and add 0 to the p-norm sum.
        Rp = _round_up(max(R, 1), 16)
        w_rT = np.zeros((Rp, Kp), np.float32)
        w_rT[:R, :K] = w_np[:, self.indices].T
        b_r = np.zeros((1, Rp), np.float32)
        b_r[0, :R] = b_np[self.indices]

        self.w_rT = jnp.asarray(w_rT, dtype=jnp.bfloat16)   # bf16 MXU operand
        self.b_r = jnp.asarray(b_r, dtype=jnp.float32)      # f32 elementwise
        self.k = K
        self.kp = Kp
        self.rp = Rp
        self.r = R

    def __call__(self, x, y, dim=None):
        Nx, Ny = x.shape[0], y.shape[0]
        x_flat = x.reshape(Nx, -1)
        y_flat = y.reshape(Ny, -1)
        assert x_flat.shape[1] == self.k and y_flat.shape[1] == self.k

        # One concatenated bf16 LHS: x rows padded to 8 sublanes, then y rows
        # padded to 8 -> 16 rows exactly fills a bf16 (16,128) sublane tile.
        # Padded batch rows get features relu(b) != 0; they are discarded by
        # the sums[:Ny, :Nx] slice below (do NOT reduce over batch in-kernel).
        Npx, Npy = _round_up(Nx, 8), _round_up(Ny, 8)
        xy = jnp.zeros((Npx + Npy, self.kp), jnp.bfloat16)
        xy = xy.at[:Nx, :self.k].set(x_flat.astype(jnp.bfloat16))
        xy = xy.at[Npx:Npx + Ny, :self.k].set(y_flat.astype(jnp.bfloat16))

        sums = fused_perceptual_sums(xy, self.w_rT, self.b_r, self.p,
                                     npx=Npx, npy=Npy, tile_k=self.tile_k)
        sums = sums[:Ny, :Nx]   # [Ny, Nx] of sum_r |fx[j] - fy[i]|^p

        if dim is None:
            # torch .norm(p, dim=None): p-norm over the whole [Ny, Nx, R] tensor.
            return jnp.sum(sums) ** (1.0 / self.p)
        if dim in (-1, 2):
            # p-norm over the reduced latent axis -> pairwise distances [Ny, Nx].
            return sums ** (1.0 / self.p)
        # TODO(synk): norms over dims 0/1 of the broadcasted difference tensor not implemented.
        raise NotImplementedError("only dim=None or dim=-1 is supported")


if __name__ == "__main__":
    # Small, self-consistent shapes: batch=2, channels=4, spatial=16,
    # latent_dim=2048 => reduced_latent_dim = int(0.01 * 2048) = 20.
    N, C, H, W = 2, 4, 16, 16
    K = C * H * W
    LATENT_DIM = 2048

    key = jax.random.PRNGKey(0)
    kx, ky, kw, kb = jax.random.split(key, 4)
    x = jax.random.normal(kx, (N, C, H, W), jnp.float32)
    y = jax.random.normal(ky, (N, C, H, W), jnp.float32)
    w = jax.random.normal(kw, (K, LATENT_DIM), jnp.float32) / np.float32(np.sqrt(K))
    b = 0.01 * jax.random.normal(kb, (LATENT_DIM,), jnp.float32)

    metric = PerceptualMetricPallas(w, b, p=2, latent_dim=LATENT_DIM, seed=0)

    dist_matrix = metric(x, y, dim=-1)    # [Ny, Nx] pairwise perceptual distances
    dist_scalar = metric(x, y, dim=None)  # scalar (full-tensor norm)
    jax.block_until_ready((dist_matrix, dist_scalar))

    assert dist_matrix.shape == (N, N)
    assert dist_scalar.shape == ()
    assert bool(jnp.all(jnp.isfinite(dist_matrix)))

    # Pure-JAX reference on the SAME bf16-rounded operands (loose tolerance:
    # MXU accumulation order + gram-form vs direct-diff formulation).
    xf = x.reshape(N, -1).astype(jnp.bfloat16).astype(jnp.float32)
    yf = y.reshape(N, -1).astype(jnp.bfloat16).astype(jnp.float32)
    wt = metric.w_rT[:, :metric.k].astype(jnp.float32)        # [Rp, K]
    fx = jnp.maximum(xf @ wt.T + metric.b_r, 0.0)             # [N, Rp]
    fy = jnp.maximum(yf @ wt.T + metric.b_r, 0.0)
    ref = jnp.sqrt(jnp.sum((fx[None, :, :] - fy[:, None, :]) ** 2, axis=-1))
    np.testing.assert_allclose(np.asarray(dist_matrix), np.asarray(ref),
                               rtol=5e-2, atol=1e-3)

    print("KERNEL_OK")
</pallas_src>

<mosaic_0001>
module attributes {stable_mosaic.version = 11 : i64} {
  func.func @_fused_metric_kernel(%arg0: i32, %arg1: memref<16x1024xbf16, #tpu.memory_space<vmem>>, %arg2: memref<32x1024xbf16, #tpu.memory_space<vmem>>, %arg3: memref<1x32xf32, #tpu.memory_space<vmem>>, %arg4: memref<8x8xf32, #tpu.memory_space<vmem>>, %arg5: memref<16x32xf32, #tpu.memory_space<vmem>>) attributes {dimension_semantics = [#tpu.dimension_semantics<arbitrary>], iteration_bounds = array<i64: 1>, scalar_prefetch = 0 : i64, scratch_operands = 1 : i64, tpu.core_type = #tpu.core_type<tc>, window_params = [{transform_indices = @transform_0, window_bounds = array<i64: 16, 1024>}, {transform_indices = @transform_1, window_bounds = array<i64: 32, 1024>}, {pipeline_mode = #tpu.pipeline_mode<synchronous>, transform_indices = @transform_2, window_bounds = array<i64: 1, 32>}, {pipeline_mode = #tpu.pipeline_mode<synchronous>, transform_indices = @transform_3, window_bounds = array<i64: 8, 8>}]} {
    %c0_i32 = arith.constant 0 : i32
    %0 = arith.cmpi eq, %arg0, %c0_i32 : i32
    %1 = arith.extui %0 : i1 to i32
    %c0_i32_0 = arith.constant 0 : i32
    %2 = arith.cmpi ne, %1, %c0_i32_0 : i32
    scf.if %2 {
      %cst_10 = arith.constant 0.000000e+00 : f32
      %12 = vector.broadcast %cst_10 : f32 to vector<16x32xf32>
      %c0_11 = arith.constant 0 : index
      %c0_12 = arith.constant 0 : index
      %13 = vector.load %arg5[%c0_11, %c0_12] : memref<16x32xf32, #tpu.memory_space<vmem>>, vector<16x32xf32>
      tpu.vector_store %arg5[%c0_11, %c0_12], %12 {strides = array<i32>} : memref<16x32xf32, #tpu.memory_space<vmem>>, vector<16x32xf32>,
    } else {
    }
    %c0 = arith.constant 0 : index
    %c0_1 = arith.constant 0 : index
    %3 = vector.load %arg5[%c0, %c0_1] : memref<16x32xf32, #tpu.memory_space<vmem>>, vector<16x32xf32>
    %c0_2 = arith.constant 0 : index
    %c0_3 = arith.constant 0 : index
    %4 = vector.load %arg1[%c0_2, %c0_3] : memref<16x1024xbf16, #tpu.memory_space<vmem>>, vector<16x1024xbf16>
    %c0_4 = arith.constant 0 : index
    %c0_5 = arith.constant 0 : index
    %5 = vector.load %arg2[%c0_4, %c0_5] : memref<32x1024xbf16, #tpu.memory_space<vmem>>, vector<32x1024xbf16>
    %cst = arith.constant dense<0.000000e+00> : vector<16x32xf32>
    %6 = tpu.matmul %4, %5, %cst {dimension_numbers = #tpu.dot_dimension_numbers<[1], [1], [0], [0], [0, 0, 1, 0], [], []>} : vector<16x1024xbf16>, vector<32x1024xbf16>, vector<16x32xf32> -> vector<16x32xf32>
    %7 = arith.addf %3, %6 : vector<16x32xf32>
    %c0_6 = arith.constant 0 : index
    %c0_7 = arith.constant 0 : index
    %8 = vector.load %arg5[%c0_6, %c0_7] : memref<16x32xf32, #tpu.memory_space<vmem>>, vector<16x32xf32>
    tpu.vector_store %arg5[%c0_6, %c0_7], %7 {strides = array<i32>} : memref<16x32xf32, #tpu.memory_space<vmem>>, vector<16x32xf32>,
    %c0_i32_8 = arith.constant 0 : i32
    %9 = arith.cmpi eq, %arg0, %c0_i32_8 : i32
    %10 = arith.extui %9 : i1 to i32
    %c0_i32_9 = arith.constant 0 : i32
    %11 = arith.cmpi ne, %10, %c0_i32_9 : i32
    scf.if %11 {
      %c0_10 = arith.constant 0 : index
      %c0_11 = arith.constant 0 : index
      %12 = vector.load %arg5[%c0_10, %c0_11] : memref<16x32xf32, #tpu.memory_space<vmem>>, vector<16x32xf32>
      %c0_12 = arith.constant 0 : index
      %c0_13 = arith.constant 0 : index
      %13 = vector.load %arg3[%c0_12, %c0_13] : memref<1x32xf32, #tpu.memory_space<vmem>>, vector<1x32xf32>
      %14 = vector.broadcast %13 : vector<1x32xf32> to vector<16x32xf32>
      %15 = arith.addf %12, %14 : vector<16x32xf32>
      %cst_14 = arith.constant 0.000000e+00 : f32
      %16 = vector.broadcast %cst_14 : f32 to vector<16x32xf32>
      %17 = arith.maximumf %15, %16 : vector<16x32xf32>
      %18 = vector.extract_strided_slice %17 {offsets = [0, 0], sizes = [8, 32], strides = [1, 1]} : vector<16x32xf32> to vector<8x32xf32>
      %19 = vector.extract_strided_slice %17 {offsets = [8, 0], sizes = [8, 32], strides = [1, 1]} : vector<16x32xf32> to vector<8x32xf32>
      %cst_15 = arith.constant dense<0.000000e+00> : vector<8x8xf32>
      %20 = tpu.matmul %19, %18, %cst_15 {dimension_numbers = #tpu.dot_dimension_numbers<[1], [1], [0], [0], [0, 0, 1, 0], [], []>} : vector<8x32xf32>, vector<8x32xf32>, vector<8x8xf32> -> vector<8x8xf32>
      %21 = arith.mulf %19, %19 : vector<8x32xf32>
      %cst_16 = arith.constant dense<0.000000e+00> : vector<8xf32>
      %22 = vector.multi_reduction <add>, %21, %cst_16 [1] : vector<8x32xf32> to vector<8xf32>
      %23 = vector.shape_cast %22 : vector<8xf32> to vector<8x1xf32>
      %cst_17 = arith.constant 1.000000e+00 : f32
      %24 = vector.broadcast %cst_17 : f32 to vector<1x32xf32>
      %25 = arith.mulf %18, %18 : vector<8x32xf32>
      %cst_18 = arith.constant dense<0.000000e+00> : vector<1x8xf32>
      %26 = tpu.matmul %24, %25, %cst_18 {dimension_numbers = #tpu.dot_dimension_numbers<[1], [1], [0], [0], [0, 0, 1, 0], [], []>} : vector<1x32xf32>, vector<8x32xf32>, vector<1x8xf32> -> vector<1x8xf32>
      %27 = vector.broadcast %23 : vector<8x1xf32> to vector<8x8xf32>
      %28 = vector.broadcast %26 : vector<1x8xf32> to vector<8x8xf32>
      %29 = arith.addf %27, %28 : vector<8x8xf32>
      %cst_19 = arith.constant 2.000000e+00 : f32
      %30 = vector.broadcast %cst_19 : f32 to vector<8x8xf32>
      %31 = arith.mulf %30, %20 : vector<8x8xf32>
      %32 = arith.subf %29, %31 : vector<8x8xf32>
      %cst_20 = arith.constant 0.000000e+00 : f32
      %33 = vector.broadcast %cst_20 : f32 to vector<8x8xf32>
      %34 = arith.maximumf %32, %33 : vector<8x8xf32>
      %c0_21 = arith.constant 0 : index
      %c0_22 = arith.constant 0 : index
      %35 = vector.load %arg4[%c0_21, %c0_22] : memref<8x8xf32, #tpu.memory_space<vmem>>, vector<8x8xf32>
      tpu.vector_store %arg4[%c0_21, %c0_22], %34 {strides = array<i32>} : memref<8x8xf32, #tpu.memory_space<vmem>>, vector<8x8xf32>,
    } else {
    }
    return
  }
  func.func @transform_0(%arg0: i32) -> (i32, i32) {
    %c0_i32 = arith.constant 0 : i32
    %c0_i32_0 = arith.constant 0 : i32
    return %c0_i32, %arg0 : i32, i32
  }
  func.func @transform_1(%arg0: i32) -> (i32, i32) {
    %c0_i32 = arith.constant 0 : i32
    %c0_i32_0 = arith.constant 0 : i32
    return %c0_i32, %arg0 : i32, i32
  }
  func.func @transform_2(%arg0: i32) -> (i32, i32) {
    %c0_i32 = arith.constant 0 : i32
    %c0_i32_0 = arith.constant 0 : i32
    %c0_i32_1 = arith.constant 0 : i32
    return %c0_i32, %c0_i32_0 : i32, i32
  }
  func.func @transform_3(%arg0: i32) -> (i32, i32) {
    %c0_i32 = arith.constant 0 : i32
    %c0_i32_0 = arith.constant 0 : i32
    %c0_i32_1 = arith.constant 0 : i32
    return %c0_i32, %c0_i32_0 : i32, i32
  }
}

</mosaic_0001>

<llo_original>
// kernel: tpu_custom_call.1
$region0: #{tpu_custom_call.1}
  #allocation0 [shape = 'u32[]', space=smem, size = 0x4, offset = 0x4, fixed_abs, tag = 'smem constant byte address 0x4 - core index']
  #allocation1 [shape = 'u32[72,128]{1,0:T(1,128)}', space=vmem, size = 0x9000, scoped, tag = 'internal scratch']
  #allocation2 [shape = 'f32[16,32]{1,0:T(8,128)}', space=vmem, size = 0x2000, scoped, tag = 'scratch operand']
  %s0 = inlined_call_operand.hbm [shape: bf16[16,1024], index: 0, kind: input, shape index: {}]
  %s1 = inlined_call_operand.hbm [shape: bf16[32,1024], index: 1, kind: input, shape index: {}]
  %s2 = inlined_call_operand.vmem [shape: f32[1,32], index: 2, kind: input, shape index: {}]
  %s3 = inlined_call_operand.hbm [shape: f32[8,8], index: 3, kind: output, shape index: {}]
  %s4 = sld [smem:[#allocation0]]
  $region38: #{tpu_custom_call.1} parent=0
    _
  %s6 = ssub.s32 1, %s4
  %s7 = scalar_select 0, %s6, %s4
  $region1: #{tpu_custom_call.1} parent=0
    #allocation3 [shape = 'u8[32768]{0}', space=vmem, size = 0x8000, scoped, tag = 'input window, operand 0, single buffered']
    #allocation4 [shape = 's32[1]{0}', space=sflag, size = 0x4, scoped, tag = 'scoped memory for tpu_custom_call.1']
    #allocation5 [shape = 's32[1]{0}', space=sflag, size = 0x4, scoped, tag = 'scoped memory for tpu_custom_call.1']
    #allocation6 [shape = 'u8[65536]{0}', space=vmem, size = 0x10000, scoped, tag = 'input window, operand 1, single buffered']
    #allocation7 [shape = 's32[1]{0}', space=sflag, size = 0x4, scoped, tag = 'scoped memory for tpu_custom_call.1']
    #allocation8 [shape = 'u8[4096]{0}', space=vmem, size = 0x1000, scoped, tag = 'output window, operand 0, single buffered']
    %8 = vsyncpa [#allocation4], 0
    %9 = vsyncpa [#allocation7], 0
    %10 = vsyncpa [#allocation5], 0
    // Predicated region
    $region2: #{tpu_custom_call.1} parent=1 // pred_check
      _
    $region3: #{tpu_custom_call.1} parent=1 // pred_check_branch
      %12 = sbr.rel (0) target = $region5
    $region4: #{tpu_custom_call.1} parent=1 // pred_region
      %14 = vsyncadd [#allocation4], 0
      %s15 = sshll.u32 %s0, 4
      %s16 = int_to_ptr.hbm [resolvable:$true] %s15
      %s17 = sshll.u32 [#allocation3], 4
      %s18 = int_to_ptr.vmem [resolvable:$true] %s17
      %23 = dma.hbm_to_vmem [thread:$0]  %s16, 1024, %s18, [#allocation4], 512, 512, 32
    $region5: #{tpu_custom_call.1} parent=1 // pred_fallthru
      _
    // Predicated region
    $region6: #{tpu_custom_call.1} parent=1 // pred_check
      _
    $region7: #{tpu_custom_call.1} parent=1 // pred_check_branch
      %25 = sbr.rel (0) target = $region9
    $region8: #{tpu_custom_call.1} parent=1 // pred_region
      %27 = vsyncadd [#allocation7], 0
      %s28 = sshll.u32 %s1, 4
      %s29 = int_to_ptr.hbm [resolvable:$true] %s28
      %s30 = sshll.u32 [#allocation6], 4
      %s31 = int_to_ptr.vmem [resolvable:$true] %s30
      %36 = dma.hbm_to_vmem [thread:$0]  %s29, 2048, %s31, [#allocation7], 512, 512, 32
    $region9: #{tpu_custom_call.1} parent=1 // pred_fallthru
      _
    // Predicated region
    $region10: #{tpu_custom_call.1} parent=1 // pred_check
      _
    $region11: #{tpu_custom_call.1} parent=1 // pred_check_branch
      %38 = sbr.rel (0) target = $region13
    $region12: #{tpu_custom_call.1} parent=1 // pred_region
      _
    $region13: #{tpu_custom_call.1} parent=1 // pred_fallthru
      _
    // Predicated region
    $region14: #{tpu_custom_call.1} parent=1 // pred_check
      _
    $region15: #{tpu_custom_call.1} parent=1 // pred_check_branch
      %40 = sbr.rel (0) target = $region17
    $region16: #{tpu_custom_call.1} parent=1 // pred_region
      %42 = dma.done [#allocation4], 1024
    $region17: #{tpu_custom_call.1} parent=1 // pred_fallthru
      _
    // Predicated region
    $region18: #{tpu_custom_call.1} parent=1 // pred_check
      _
    $region19: #{tpu_custom_call.1} parent=1 // pred_check_branch
      %44 = sbr.rel (0) target = $region21
    $region20: #{tpu_custom_call.1} parent=1 // pred_region
      %46 = dma.done [#allocation7], 2048
    $region21: #{tpu_custom_call.1} parent=1 // pred_fallthru
      _
    %p48 = scmp.eq.s32.totalorder 0, 0
    // Predicated region
    $region22: #{tpu_custom_call.1} parent=1 // pred_check
      %p49 = pneg %p48
    $region23: #{tpu_custom_call.1} parent=1 // pred_check_branch
      %51 = sbr.rel (%p49) target = $region25
    $region24: #{tpu_custom_call.1} parent=1 // pred_region
      %vm52 = vcmask 261120
      %53 = vst.msk [vmem:[#allocation2] sm:$0xff] %vm52, 0.0
      %54 = vst.msk [vmem:[#allocation2 + $0x8] sm:$0xff] %vm52, 0.0
    $region25: #{tpu_custom_call.1} parent=1 // pred_fallthru
      _
    %v55 = vld [vmem:[#allocation2] sm:$0xff]
    %v56 = vld [vmem:[#allocation2 + $0x8] sm:$0xff]
    %v57 = vld [vmem:[#allocation3] sm:$0xff]
    %v58 = vld [vmem:[#allocation3 + $0x8] sm:$0xff]
    %v59 = vld [vmem:[#allocation3 + $0x10] sm:$0xff]
    %v60 = vld [vmem:[#allocation3 + $0x18] sm:$0xff]
    %v61 = vld [vmem:[#allocation3 + $0x20] sm:$0xff]
    %v62 = vld [vmem:[#allocation3 + $0x28] sm:$0xff]
    %v63 = vld [vmem:[#allocation3 + $0x30] sm:$0xff]
    %v64 = vld [vmem:[#allocation3 + $0x38] sm:$0xff]
    %v65 = vld [vmem:[#allocation6] sm:$0xff]
    %v66 = vld [vmem:[#allocation6 + $0x8] sm:$0xff]
    %v67 = vld [vmem:[#allocation6 + $0x10] sm:$0xff]
    %v68 = vld [vmem:[#allocation6 + $0x18] sm:$0xff]
    %v69 = vld [vmem:[#allocation6 + $0x20] sm:$0xff]
    %v70 = vld [vmem:[#allocation6 + $0x28] sm:$0xff]
    %v71 = vld [vmem:[#allocation6 + $0x30] sm:$0xff]
    %v72 = vld [vmem:[#allocation6 + $0x38] sm:$0xff]
    %v73 = vld [vmem:[#allocation6 + $0x40] sm:$0xff]
    %v74 = vld [vmem:[#allocation6 + $0x48] sm:$0xff]
    %v75 = vld [vmem:[#allocation6 + $0x50] sm:$0xff]
    %v76 = vld [vmem:[#allocation6 + $0x58] sm:$0xff]
    %v77 = vld [vmem:[#allocation6 + $0x60] sm:$0xff]
    %v78 = vld [vmem:[#allocation6 + $0x68] sm:$0xff]
    %v79 = vld [vmem:[#allocation6 + $0x70] sm:$0xff]
    %v80 = vld [vmem:[#allocation6 + $0x78] sm:$0xff]
    %v89 = vunpack.c.l.b16 %v57
    %v90 = vunpack.c.h.b16 %v57
    %v91 = vunpack.c.l.b16 %v58
    %v92 = vunpack.c.h.b16 %v58
    %v93 = vunpack.c.l.b16 %v59
    %v94 = vunpack.c.h.b16 %v59
    %v95 = vunpack.c.l.b16 %v60
    %v96 = vunpack.c.h.b16 %v60
    %v97 = vunpack.c.l.b16 %v61
    %v98 = vunpack.c.h.b16 %v61
    %v99 = vunpack.c.l.b16 %v62
    %v100 = vunpack.c.h.b16 %v62
    %v101 = vunpack.c.l.b16 %v63
    %v102 = vunpack.c.h.b16 %v63
    %v103 = vunpack.c.l.b16 %v64
    %v104 = vunpack.c.h.b16 %v64
    %v105 = vpack.c.b16 %v97, %v89
    %v106 = vpack.c.b16 %v98, %v90
    %v107 = vpack.c.b16 %v99, %v91
    %v108 = vpack.c.b16 %v100, %v92
    %v109 = vpack.c.b16 %v101, %v93
    %v110 = vpack.c.b16 %v102, %v94
    %v111 = vpack.c.b16 %v103, %v95
    %v112 = vpack.c.b16 %v104, %v96
    %v137 = vunpack.c.l.b16 %v65
    %v138 = vunpack.c.h.b16 %v65
    %v139 = vunpack.c.l.b16 %v66
    %v140 = vunpack.c.h.b16 %v66
    %v141 = vunpack.c.l.b16 %v67
    %v142 = vunpack.c.h.b16 %v67
    %v143 = vunpack.c.l.b16 %v68
    %v144 = vunpack.c.h.b16 %v68
    %v145 = vunpack.c.l.b16 %v69
    %v146 = vunpack.c.h.b16 %v69
    %v147 = vunpack.c.l.b16 %v70
    %v148 = vunpack.c.h.b16 %v70
    %v149 = vunpack.c.l.b16 %v71
    %v150 = vunpack.c.h.b16 %v71
    %v151 = vunpack.c.l.b16 %v72
    %v152 = vunpack.c.h.b16 %v72
    %v153 = vunpack.c.l.b16 %v73
    %v154 = vunpack.c.h.b16 %v73
    %v155 = vunpack.c.l.b16 %v74
    %v156 = vunpack.c.h.b16 %v74
    %v157 = vunpack.c.l.b16 %v75
    %v158 = vunpack.c.h.b16 %v75
    %v159 = vunpack.c.l.b16 %v76
    %v160 = vunpack.c.h.b16 %v76
    %v161 = vunpack.c.l.b16 %v77
    %v162 = vunpack.c.h.b16 %v77
    %v163 = vunpack.c.l.b16 %v78
    %v164 = vunpack.c.h.b16 %v78
    %v165 = vunpack.c.l.b16 %v79
    %v166 = vunpack.c.h.b16 %v79
    %v167 = vunpack.c.l.b16 %v80
    %v168 = vunpack.c.h.b16 %v80
    %v169 = vpack.c.b16 %v145, %v137
    %v170 = vpack.c.b16 %v146, %v138
    %v171 = vpack.c.b16 %v147, %v139
    %v172 = vpack.c.b16 %v148, %v140
    %v173 = vpack.c.b16 %v149, %v141
    %v174 = vpack.c.b16 %v150, %v142
    %v175 = vpack.c.b16 %v151, %v143
    %v176 = vpack.c.b16 %v152, %v144
    %v177 = vpack.c.b16 %v161, %v153
    %v178 = vpack.c.b16 %v162, %v154
    %v179 = vpack.c.b16 %v163, %v155
    %v180 = vpack.c.b16 %v164, %v156
    %v181 = vpack.c.b16 %v165, %v157
    %v182 = vpack.c.b16 %v166, %v158
    %v183 = vpack.c.b16 %v167, %v159
    %v184 = vpack.c.b16 %v168, %v160
    %201 = vmatpush.bf16.xpose.msra.mxu0 0
    %202 = vmatpush.bf16.xpose.msra.mxu0 0
    %203 = vmatpush.bf16.xpose.msra.mxu0 0
    %204 = vmatpush.bf16.xpose.msra.mxu0 0
    %205 = vmatpush.bf16.xpose.msra.mxu0 0
    %206 = vmatpush.bf16.xpose.msra.mxu0 0
    %207 = vmatpush.bf16.xpose.msra.mxu0 %v177
    %208 = vmatpush.bf16.xpose.msra.mxu0 %v169
    %209 = vmatmul.bf16.gmra.mxu0 %v105
    %v210 = vpop.f32.mrf.mxu0
    %v211 = vadd.f32 0.0, %v210
    %v212 = vpop.f32.mrf.mxu0
    %v213 = vadd.f32 0.0, %v212
    %214 = vdwg.mxu0
    %215 = vmatpush.bf16.xpose.msra.mxu0 0
    %216 = vmatpush.bf16.xpose.msra.mxu0 0
    %217 = vmatpush.bf16.xpose.msra.mxu0 0
    %218 = vmatpush.bf16.xpose.msra.mxu0 0
    %219 = vmatpush.bf16.xpose.msra.mxu0 0
    %220 = vmatpush.bf16.xpose.msra.mxu0 0
    %221 = vmatpush.bf16.xpose.msra.mxu0 %v178
    %222 = vmatpush.bf16.xpose.msra.mxu0 %v170
    %223 = vmatmul.bf16.gmra.mxu0 %v106
    %v224 = vpop.f32.mrf.mxu0
    %v225 = vadd.f32 %v211, %v224
    %v226 = vpop.f32.mrf.mxu0
    %v227 = vadd.f32 %v213, %v226
    %228 = vdwg.mxu0
    %229 = vmatpush.bf16.xpose.msra.mxu0 0
    %230 = vmatpush.bf16.xpose.msra.mxu0 0
    %231 = vmatpush.bf16.xpose.msra.mxu0 0
    %232 = vmatpush.bf16.xpose.msra.mxu0 0
    %233 = vmatpush.bf16.xpose.msra.mxu0 0
    %234 = vmatpush.bf16.xpose.msra.mxu0 0
    %235 = vmatpush.bf16.xpose.msra.mxu0 %v179
    %236 = vmatpush.bf16.xpose.msra.mxu0 %v171
    %237 = vmatmul.bf16.gmra.mxu0 %v107
    %v238 = vpop.f32.mrf.mxu0
    %v239 = vadd.f32 %v225, %v238
    %v240 = vpop.f32.mrf.mxu0
    %v241 = vadd.f32 %v227, %v240
    %242 = vdwg.mxu0
    %243 = vmatpush.bf16.xpose.msra.mxu0 0
    %244 = vmatpush.bf16.xpose.msra.mxu0 0
    %245 = vmatpush.bf16.xpose.msra.mxu0 0
    %246 = vmatpush.bf16.xpose.msra.mxu0 0
    %247 = vmatpush.bf16.xpose.msra.mxu0 0
    %248 = vmatpush.bf16.xpose.msra.mxu0 0
    %249 = vmatpush.bf16.xpose.msra.mxu0 %v180
    %250 = vmatpush.bf16.xpose.msra.mxu0 %v172
    %251 = vmatmul.bf16.gmra.mxu0 %v108
    %v252 = vpop.f32.mrf.mxu0
    %v253 = vadd.f32 %v239, %v252
    %v254 = vpop.f32.mrf.mxu0
    %v255 = vadd.f32 %v241, %v254
    %256 = vdwg.mxu0
    %257 = vmatpush.bf16.xpose.msra.mxu0 0
    %258 = vmatpush.bf16.xpose.msra.mxu0 0
    %259 = vmatpush.bf16.xpose.msra.mxu0 0
    %260 = vmatpush.bf16.xpose.msra.mxu0 0
    %261 = vmatpush.bf16.xpose.msra.mxu0 0
    %262 = vmatpush.bf16.xpose.msra.mxu0 0
    %263 = vmatpush.bf16.xpose.msra.mxu0 %v181
    %264 = vmatpush.bf16.xpose.msra.mxu0 %v173
    %265 = vmatmul.bf16.gmra.mxu0 %v109
    %v266 = vpop.f32.mrf.mxu0
    %v267 = vadd.f32 %v253, %v266
    %v268 = vpop.f32.mrf.mxu0
    %v269 = vadd.f32 %v255, %v268
    %270 = vdwg.mxu0
    %271 = vmatpush.bf16.xpose.msra.mxu0 0
    %272 = vmatpush.bf16.xpose.msra.mxu0 0
    %273 = vmatpush.bf16.xpose.msra.mxu0 0
    %274 = vmatpush.bf16.xpose.msra.mxu0 0
    %275 = vmatpush.bf16.xpose.msra.mxu0 0
    %276 = vmatpush.bf16.xpose.msra.mxu0 0
    %277 = vmatpush.bf16.xpose.msra.mxu0 %v182
    %278 = vmatpush.bf16.xpose.msra.mxu0 %v174
    %279 = vmatmul.bf16.gmra.mxu0 %v110
    %v280 = vpop.f32.mrf.mxu0
    %v281 = vadd.f32 %v267, %v280
    %v282 = vpop.f32.mrf.mxu0
    %v283 = vadd.f32 %v269, %v282
    %284 = vdwg.mxu0
    %285 = vmatpush.bf16.xpose.msra.mxu0 0
    %286 = vmatpush.bf16.xpose.msra.mxu0 0
    %287 = vmatpush.bf16.xpose.msra.mxu0 0
    %288 = vmatpush.bf16.xpose.msra.mxu0 0
    %289 = vmatpush.bf16.xpose.msra.mxu0 0
    %290 = vmatpush.bf16.xpose.msra.mxu0 0
    %291 = vmatpush.bf16.xpose.msra.mxu0 %v183
    %292 = vmatpush.bf16.xpose.msra.mxu0 %v175
    %293 = vmatmul.bf16.gmra.mxu0 %v111
    %v294 = vpop.f32.mrf.mxu0
    %v295 = vadd.f32 %v281, %v294
    %v296 = vpop.f32.mrf.mxu0
    %v297 = vadd.f32 %v283, %v296
    %298 = vdwg.mxu0
    %299 = vmatpush.bf16.xpose.msra.mxu0 0
    %300 = vmatpush.bf16.xpose.msra.mxu0 0
    %301 = vmatpush.bf16.xpose.msra.mxu0 0
    %302 = vmatpush.bf16.xpose.msra.mxu0 0
    %303 = vmatpush.bf16.xpose.msra.mxu0 0
    %304 = vmatpush.bf16.xpose.msra.mxu0 0
    %305 = vmatpush.bf16.xpose.msra.mxu0 %v184
    %306 = vmatpush.bf16.xpose.msra.mxu0 %v176
    %307 = vmatmul.bf16.gmra.mxu0 %v112
    %v308 = vpop.f32.mrf.mxu0
    %v309 = vadd.f32 %v295, %v308
    %v310 = vpop.f32.mrf.mxu0
    %v311 = vadd.f32 %v297, %v310
    %312 = vdwg.mxu0
    %v313 = vadd.f32 %v55, %v309
    %v314 = vadd.f32 %v56, %v311
    %vm315 = vcmask 261120
    %316 = vst.msk [vmem:[#allocation2] sm:$0xff] %vm315, %v313
    %317 = vst.msk [vmem:[#allocation2 + $0x8] sm:$0xff] %vm315, %v314
    // Predicated region
    $region26: #{tpu_custom_call.1} parent=1 // pred_check
      %p318 = pneg %p48
    $region27: #{tpu_custom_call.1} parent=1 // pred_check_branch
      %320 = sbr.rel (%p318) target = $region29
    $region28: #{tpu_custom_call.1} parent=1 // pred_region
      %v321 = vld [vmem:[#allocation2] sm:$0xff]
      %v322 = vld [vmem:[#allocation2 + $0x8] sm:$0xff]
      %v323 = vld [vmem:[%s2] sm:$0x1]
      %v325 = vperm.slane %v323, 0
      %v327 = vadd.f32 %v321, %v325
      %v328 = vadd.f32 %v322, %v325
      %v329 = vmax.f32 %v327, 0.0
      %v330 = vmax.f32 %v328, 0.0
      %v332 = vsel %vm315, %v330, 0
      %v335 = vsel %vm315, %v329, 0
      %337 = vmatpush.xpose.msra.mxu0 0.0
      %338 = vmatpush.xpose.msra.mxu0 0.0
      %339 = vmatpush.xpose.msra.mxu0 0.0
      %340 = vmatpush.xpose.msra.mxu0 0.0
      %341 = vmatpush.xpose.msra.mxu0 0.0
      %342 = vmatpush.xpose.msra.mxu0 0.0
      %343 = vmatpush.xpose.msra.mxu0 0.0
      %344 = vmatpush.xpose.msra.mxu0 0.0
      %345 = vmatpush.xpose.msra.mxu0 0.0
      %346 = vmatpush.xpose.msra.mxu0 0.0
      %347 = vmatpush.xpose.msra.mxu0 0.0
      %348 = vmatpush.xpose.msra.mxu0 0.0
      %349 = vmatpush.xpose.msra.mxu0 0.0
      %350 = vmatpush.xpose.msra.mxu0 0.0
      %351 = vmatpush.xpose.msra.mxu0 0.0
      %352 = vmatpush.xpose.msra.mxu0 %v335
      %353 = vmatmul.f32.gmra.mxu0 %v332
      %v354 = vpop.f32.mrf.mxu0
      %v355 = vadd.f32 0.0, %v354
      %356 = vdwg.mxu0
      %v357 = vmul.f32 %v330, %v330
      %v358 = vsel %vm315, %v357, 0.0
      %359 = vadd.xlane.f32.xlu0 %v358
      %v360 = vpop.xlane.xlu0 %359
      %v361 = vmul.f32 %v329, %v329
      %v363 = vsel %vm315, 1.0, 0
      %v366 = vsel %vm315, %v361, 0
      %368 = vmatpush.xpose.msra.mxu0 0.0
      %369 = vmatpush.xpose.msra.mxu0 0.0
      %370 = vmatpush.xpose.msra.mxu0 0.0
      %371 = vmatpush.xpose.msra.mxu0 0.0
      %372 = vmatpush.xpose.msra.mxu0 0.0
      %373 = vmatpush.xpose.msra.mxu0 0.0
      %374 = vmatpush.xpose.msra.mxu0 0.0
      %375 = vmatpush.xpose.msra.mxu0 0.0
      %376 = vmatpush.xpose.msra.mxu0 0.0
      %377 = vmatpush.xpose.msra.mxu0 0.0
      %378 = vmatpush.xpose.msra.mxu0 0.0
      %379 = vmatpush.xpose.msra.mxu0 0.0
      %380 = vmatpush.xpose.msra.mxu0 0.0
      %381 = vmatpush.xpose.msra.mxu0 0.0
      %382 = vmatpush.xpose.msra.mxu0 0.0
      %383 = vmatpush.xpose.msra.mxu0 %v366
      %384 = vmatmul.f32.gmra.mxu0 %v363
      %v385 = vpop.f32.mrf.mxu0
      %v386 = vadd.f32 0.0, %v385
      %387 = vdwg.mxu0
      %v388 = vperm.slane %v386, 0
      %v389 = vadd.f32 %v360, %v388
      %v390 = vmul.f32 %v355, 2.0
      %v391 = vsub.f32 %v389, %v390
      %v392 = vmax.f32 %v391, 0.0
      %vm393 = vcmask 64512
      %394 = vst.msk [vmem:[#allocation8] sm:$0xff] %vm393, %v392
    $region29: #{tpu_custom_call.1} parent=1 // pred_fallthru
      _
    // Predicated region
    $region30: #{tpu_custom_call.1} parent=1 // pred_check
      _
    $region31: #{tpu_custom_call.1} parent=1 // pred_check_branch
      %396 = sbr.rel (0) target = $region33
    $region32: #{tpu_custom_call.1} parent=1 // pred_region
      %398 = vsyncadd [#allocation5], 0
      %s400 = sshll.u32 [#allocation8], 4
      %s401 = int_to_ptr.vmem [resolvable:$true] %s400
      %s402 = sshll.u32 %s3, 4
      %s403 = int_to_ptr.hbm [resolvable:$true] %s402
      %405 = dma.vmem_to_hbm [thread:$0]  %s401, 128, %s403, [#allocation5]
    $region33: #{tpu_custom_call.1} parent=1 // pred_fallthru
      _
    // Predicated region
    $region34: #{tpu_custom_call.1} parent=1 // pred_check
      _
    $region35: #{tpu_custom_call.1} parent=1 // pred_check_branch
      %407 = sbr.rel (0) target = $region37
    $region36: #{tpu_custom_call.1} parent=1 // pred_region
      %409 = dma.done [#allocation5], 128
    $region37: #{tpu_custom_call.1} parent=1 // pred_fallthru
      _
    %410 = vsyncpa [#allocation4], 1
    %411 = vsyncpa [#allocation7], 1
    %412 = vsyncpa [#allocation5], 1

</llo_original>
